<compile_context>
chip_gen: v5e
topology: v5e:2x2
jax: 0.10.0
libtpu: 0.0.40
codegen_flags: <defaults>
</compile_context>

<pallas_src>
import functools

import jax
import jax.numpy as jnp
from jax import lax
from jax.experimental import pallas as pl
from jax.experimental.pallas import tpu as pltpu


def _round_up(x, m):
    return (x + m - 1) // m * m


# ---------------------------------------------------------------------------
# Kernel 1: Conv1d(kernel_size=n, VALID) as a single unfolded matmul.
# ---------------------------------------------------------------------------
def _conv_kernel(x_ref, w_ref, b_ref, out_ref):
    """x_ref: (B*L, n*E) bf16, w_ref: (n*E, E) bf16, b_ref: (1, E) f32,
    out_ref: (B*L, E) bf16."""
    acc = jnp.dot(x_ref[...], w_ref[...], preferred_element_type=jnp.float32)
    out_ref[...] = (acc + b_ref[...]).astype(out_ref.dtype)


def _conv1d_valid(x_unf_flat, w_cat, bias):
    """Single-block conv matmul; run once per n-gram group.

    TODO(synk): tile over the B*L rows for very large B*S*E; at keyphrase
    sizes the conv is far from the bottleneck so one block is kept.
    """
    BL = x_unf_flat.shape[0]
    E = w_cat.shape[1]
    return pl.pallas_call(
        _conv_kernel,
        out_shape=jax.ShapeDtypeStruct((BL, E), jnp.bfloat16),
    )(x_unf_flat, w_cat, bias)


# ---------------------------------------------------------------------------
# Kernel 2: masked max-pool over the sequence axis (streamed over masks).
# ---------------------------------------------------------------------------
def _pool_kernel(conv_ref, mask_ref, out_ref, *, B, L, E, TM):
    """Running masked max over valid conv positions.

    conv_ref : (B, L, E)   bf16  conv output           (grid-resident)
    mask_ref : (B, TM, L)  bf16  keyphrase masks       (streamed over M)
    out_ref  : (B, TM, E)  f32   pooled embeddings     (streamed over M)
    """
    acc = jnp.full((B, TM, E), -jnp.inf, dtype=jnp.float32)
    # Running max keeps the live set at ~B*TM*E (vs TM*B*L*E for the naive
    # broadcast).  conv row -> sublane broadcast, mask column -> lane
    # broadcast; pure VPU work, no relayouts.  L is static, loop unrolls.
    for l in range(L):
        c = conv_ref[:, l:l + 1, :].astype(jnp.float32)    # (B, 1, E)
        m = mask_ref[:, :, l:l + 1].astype(jnp.float32)    # (B, TM, 1)
        acc = jnp.maximum(acc, c * m)
    out_ref[...] = acc


def _masked_max_pool(conv, masks, *, TM):
    """conv: (B, L, E) bf16; masks: (B, M_pad, L) bf16, M_pad % TM == 0.
    Returns (B, M_pad, E) f32."""
    B, L, E = conv.shape
    _, M_pad, _ = masks.shape
    assert masks.shape == (B, M_pad, L)
    assert M_pad % TM == 0
    kernel = functools.partial(_pool_kernel, B=B, L=L, E=E, TM=TM)
    return pl.pallas_call(
        kernel,
        out_shape=jax.ShapeDtypeStruct((B, M_pad, E), jnp.float32),
        grid=(M_pad // TM,),
        in_specs=[
            # Grid-invariant conv input (constant index_map).  A single-buffer
            # hint (pipeline_mode=pl.Buffered(1)) would drop the redundant
            # second VMEM copy; default buffering kept for portability.
            pl.BlockSpec((B, L, E), lambda m: (0, 0, 0)),
            pl.BlockSpec((B, TM, L), lambda m: (0, m, 0)),   # streamed masks
        ],
        out_specs=pl.BlockSpec((B, TM, E), lambda m: (0, m, 0)),
        compiler_params=pltpu.CompilerParams(
            # The conv is an input (not step-0 scratch), so every M tile is
            # independent -> safe to shard across TensorCores (v7x megacore).
            dimension_semantics=("parallel",)),
    )(conv, masks)


# ---------------------------------------------------------------------------
# Forward wrapper (mirrors KeyphraseEmbeddingPooler.forward).
# ---------------------------------------------------------------------------
def keyphrase_embedding_pooler_forward(word_embeddings, phrase_masks, weights,
                                       biases, max_phrase_length, *,
                                       mask_tile=64):
    """word_embeddings : (B, S, E)
    phrase_masks    : list of (Mi, cols) arrays; grouped by cols == n; cols
                      must be broadcastable against L = S - n + 1 (as in torch).
    weights[n-1]    : (E_out, E_in, n)   (PyTorch Conv1d weight layout)
    biases[n-1]     : (E,)
    Returns (num_masks, B, E) — same as torch.stack of per-mask pooled embeds.
    """
    B, S, E = word_embeddings.shape
    x_bf16 = word_embeddings.astype(jnp.bfloat16)
    outs = []
    for n in range(1, max_phrase_length + 1):
        current = [m for m in phrase_masks if m.shape[1] == n]
        if not current:
            continue
        L = S - n + 1
        assert L >= 1, "sequence shorter than conv kernel size"

        # ---- Conv1d as one unfolded matmul (deep K = n*E, one MXU pass). ----
        x_unf = jnp.concatenate([x_bf16[:, k:k + L, :] for k in range(n)],
                                axis=-1)                       # (B, L, n*E)
        # (E_out, E_in, n) -> (n, E_in, E_out) -> (n*E_in, E_out)
        w_cat = jnp.transpose(weights[n - 1], (2, 1, 0)).reshape(n * E, E)
        w_cat = w_cat.astype(jnp.bfloat16)
        bias = biases[n - 1].reshape(1, E).astype(jnp.float32)
        conv = _conv1d_valid(x_unf.reshape(B * L, n * E), w_cat, bias)
        conv = conv.reshape(B, L, E)                           # (B, L, E) bf16

        # ---- Compact masks in sublane-dense layout (B, M, L).  bf16 is exact
        # for 0/1 indicator masks (non-binary masks would lose <0.4% rel). ----
        group = []
        for mask in current:
            Mi, ncols = mask.shape
            m = mask.astype(jnp.bfloat16)
            if Mi == 1:
                m = jnp.broadcast_to(m, (B, ncols))
            if ncols == 1:
                m = jnp.broadcast_to(m[:, :1], (B, L))
            group.append(m)                                    # (B, L)
        M = len(group)
        TM = max(8, min(_round_up(mask_tile, 8), _round_up(M, 8)))
        M_pad = _round_up(M, TM)
        masks = jnp.stack(group, axis=1)                       # (B, M, L)
        masks = jnp.pad(masks, ((0, 0), (0, M_pad - M), (0, 0)))

        pooled = _masked_max_pool(conv, masks, TM=TM)          # (B, M_pad, E)
        outs.append(jnp.transpose(pooled, (1, 0, 2))[:M])      # (M, B, E)
    if not outs:
        # Faithful to the reference module: torch.empty(0, embedding_dim).
        return jnp.zeros((0, E), jnp.float32)
    return jnp.concatenate(outs, axis=0)


# ---------------------------------------------------------------------------
# Pure-JAX (f32) replica of the PyTorch forward, for verification.
# ---------------------------------------------------------------------------
def reference_forward(word_embeddings, phrase_masks, weights, biases,
                      max_phrase_length):
    x = jnp.transpose(word_embeddings, (0, 2, 1))              # (B, E, S)
    outs = []
    for n in range(1, max_phrase_length + 1):
        current = [m for m in phrase_masks if m.shape[1] == n]
        if not current:
            continue
        conv_out = lax.conv_general_dilated(
            x, weights[n - 1], window_strides=(1,), padding="VALID",
            dimension_numbers=("NCH", "OIH", "NCH"))
        conv_out = conv_out + biases[n - 1][None, :, None]     # (B, E, L)
        for mask in current:
            masked = conv_out * mask[:, None, :]
            outs.append(jnp.max(masked, axis=2))
    return jnp.stack(outs, axis=0)


if __name__ == "__main__":
    key = jax.random.PRNGKey(0)
    B, S, E = 2, 9, 128
    max_phrase_length = 5

    k_x, k_w, k_m = jax.random.split(key, 3)
    word_embeddings = jax.random.normal(k_x, (B, S, E), jnp.float32)

    # Deterministic synthetic Conv1d parameters: weight (E, E, n), bias (E,).
    weights, biases = [], []
    wkeys = jax.random.split(k_w, max_phrase_length * 2)
    for n in range(1, max_phrase_length + 1):
        fan_in = E * n
        weights.append(jax.random.normal(wkeys[2 * (n - 1)], (E, E, n),
                                         jnp.float32) / jnp.sqrt(fan_in))
        biases.append(jax.random.normal(wkeys[2 * (n - 1) + 1], (E,),
                                        jnp.float32) * 0.01)

    # Masks: second dim selects the conv (n); shapes chosen to be broadcastable
    # against the conv output length exactly like the torch code requires
    # (n=1 masks, and n=5 masks with L = S - 5 + 1 = 5).
    mk = jax.random.split(k_m, 4)
    phrase_masks = [
        (jax.random.uniform(mk[0], (B, 1)) > 0.5).astype(jnp.float32),  # n = 1
        (jax.random.uniform(mk[1], (1, 1)) > 0.5).astype(jnp.float32),  # n = 1
        (jax.random.uniform(mk[2], (B, 5)) > 0.5).astype(jnp.float32),  # n = 5
        (jax.random.uniform(mk[3], (1, 5)) > 0.5).astype(jnp.float32),  # n = 5
    ]
    # Conv layers for n in {2,3,4} are instantiated but (as in the reference
    # module) skipped when no mask of that width is supplied.

    out = keyphrase_embedding_pooler_forward(
        word_embeddings, phrase_masks, weights, biases, max_phrase_length)
    out = jax.block_until_ready(out)

    ref = reference_forward(word_embeddings, phrase_masks, weights, biases,
                            max_phrase_length)
    assert out.shape == (len(phrase_masks), B, E), out.shape
    max_err = float(jnp.max(jnp.abs(out - ref)))
    # bf16 matmul inputs + bf16 conv storage vs. f32 reference -> loose tol.
    assert jnp.allclose(out, ref, atol=5e-2, rtol=5e-2), max_err
    print("KERNEL_OK")
</pallas_src>

<mosaic_0001>
module attributes {stable_mosaic.version = 11 : i64} {
  func.func @_conv_kernel(%arg0: memref<18x128xbf16, #tpu.memory_space<vmem>>, %arg1: memref<128x128xbf16, #tpu.memory_space<vmem>>, %arg2: memref<1x128xf32, #tpu.memory_space<vmem>>, %arg3: memref<18x128xbf16, #tpu.memory_space<vmem>>) attributes {dimension_semantics = [], scalar_prefetch = 0 : i64, scratch_operands = 0 : i64, tpu.core_type = #tpu.core_type<tc>} {
    %c0 = arith.constant 0 : index
    %c0_0 = arith.constant 0 : index
    %0 = vector.load %arg0[%c0, %c0_0] : memref<18x128xbf16, #tpu.memory_space<vmem>>, vector<18x128xbf16>
    %c0_1 = arith.constant 0 : index
    %c0_2 = arith.constant 0 : index
    %1 = vector.load %arg1[%c0_1, %c0_2] : memref<128x128xbf16, #tpu.memory_space<vmem>>, vector<128x128xbf16>
    %cst = arith.constant dense<0.000000e+00> : vector<18x128xf32>
    %2 = tpu.matmul %0, %1, %cst {dimension_numbers = #tpu.dot_dimension_numbers<[1], [0], [0], [1], [0, 0, 1, 1], [], []>} : vector<18x128xbf16>, vector<128x128xbf16>, vector<18x128xf32> -> vector<18x128xf32>
    %c0_3 = arith.constant 0 : index
    %c0_4 = arith.constant 0 : index
    %3 = vector.load %arg2[%c0_3, %c0_4] : memref<1x128xf32, #tpu.memory_space<vmem>>, vector<1x128xf32>
    %4 = vector.broadcast %3 : vector<1x128xf32> to vector<18x128xf32>
    %5 = arith.addf %2, %4 : vector<18x128xf32>
    %6 = arith.truncf %5 : vector<18x128xf32> to vector<18x128xbf16>
    %c0_5 = arith.constant 0 : index
    %c0_6 = arith.constant 0 : index
    %7 = vector.load %arg3[%c0_5, %c0_6] : memref<18x128xbf16, #tpu.memory_space<vmem>>, vector<18x128xbf16>
    tpu.vector_store %arg3[%c0_5, %c0_6], %6 {strides = array<i32>} : memref<18x128xbf16, #tpu.memory_space<vmem>>, vector<18x128xbf16>,
    return
  }
}

</mosaic_0001>

<llo_original>
// kernel: tpu_custom_call.1
$region0: #{tpu_custom_call.1}
  #allocation0 [shape = 'u32[]', space=smem, size = 0x4, offset = 0x4, fixed_abs, tag = 'smem constant byte address 0x4 - core index']
  #allocation1 [shape = 'u32[72,128]{1,0:T(1,128)}', space=vmem, size = 0x9000, scoped, tag = 'internal scratch']
  %s0 = inlined_call_operand.hbm [shape: bf16[18,128], index: 0, kind: input, shape index: {}]
  %s1 = inlined_call_operand.hbm [shape: bf16[128,128], index: 1, kind: input, shape index: {}]
  %s2 = inlined_call_operand.vmem [shape: f32[1,128], index: 2, kind: input, shape index: {}]
  %s3 = inlined_call_operand.hbm [shape: bf16[18,128], index: 3, kind: output, shape index: {}]
  %s4 = sld [smem:[#allocation0]]
  $region30: #{tpu_custom_call.1} parent=0
    _
  %s6 = ssub.s32 1, %s4
  %s7 = scalar_select 0, %s6, %s4
  $region1: #{tpu_custom_call.1} parent=0
    #allocation2 [shape = 'u8[6144]{0}', space=vmem, size = 0x1800, scoped, tag = 'input window, operand 0, single buffered']
    #allocation3 [shape = 's32[1]{0}', space=sflag, size = 0x4, scoped, tag = 'scoped memory for tpu_custom_call.1']
    #allocation4 [shape = 's32[1]{0}', space=sflag, size = 0x4, scoped, tag = 'scoped memory for tpu_custom_call.1']
    #allocation5 [shape = 'u8[32768]{0}', space=vmem, size = 0x8000, scoped, tag = 'input window, operand 1, single buffered']
    #allocation6 [shape = 's32[1]{0}', space=sflag, size = 0x4, scoped, tag = 'scoped memory for tpu_custom_call.1']
    #allocation7 [shape = 'u8[6144]{0}', space=vmem, size = 0x1800, scoped, tag = 'output window, operand 0, single buffered']
    %8 = vsyncpa [#allocation3], 0
    %9 = vsyncpa [#allocation6], 0
    %10 = vsyncpa [#allocation4], 0
    // Predicated region
    $region2: #{tpu_custom_call.1} parent=1 // pred_check
      _
    $region3: #{tpu_custom_call.1} parent=1 // pred_check_branch
      %12 = sbr.rel (0) target = $region5
    $region4: #{tpu_custom_call.1} parent=1 // pred_region
      %14 = vsyncadd [#allocation3], 0
      %s15 = sshll.u32 %s0, 4
      %s16 = int_to_ptr.hbm [resolvable:$true] %s15
      %s17 = sshll.u32 [#allocation2], 4
      %s18 = int_to_ptr.vmem [resolvable:$true] %s17
      %23 = dma.hbm_to_vmem [thread:$0]  %s16, 192, %s18, [#allocation3], 64, 64, 4
    $region5: #{tpu_custom_call.1} parent=1 // pred_fallthru
      _
    // Predicated region
    $region6: #{tpu_custom_call.1} parent=1 // pred_check
      _
    $region7: #{tpu_custom_call.1} parent=1 // pred_check_branch
      %25 = sbr.rel (0) target = $region9
    $region8: #{tpu_custom_call.1} parent=1 // pred_region
      %27 = vsyncadd [#allocation6], 0
      %s28 = sshll.u32 %s1, 4
      %s29 = int_to_ptr.hbm [resolvable:$true] %s28
      %s30 = sshll.u32 [#allocation5], 4
      %s31 = int_to_ptr.vmem [resolvable:$true] %s30
      %36 = dma.hbm_to_vmem [thread:$0]  %s29, 1024, %s31, [#allocation6], 64, 64, 4
    $region9: #{tpu_custom_call.1} parent=1 // pred_fallthru
      _
    // Predicated region
    $region10: #{tpu_custom_call.1} parent=1 // pred_check
      _
    $region11: #{tpu_custom_call.1} parent=1 // pred_check_branch
      %38 = sbr.rel (0) target = $region13
    $region12: #{tpu_custom_call.1} parent=1 // pred_region
      _
    $region13: #{tpu_custom_call.1} parent=1 // pred_fallthru
      _
    // Predicated region
    $region14: #{tpu_custom_call.1} parent=1 // pred_check
      _
    $region15: #{tpu_custom_call.1} parent=1 // pred_check_branch
      %40 = sbr.rel (0) target = $region17
    $region16: #{tpu_custom_call.1} parent=1 // pred_region
      %42 = dma.done [#allocation3], 192
    $region17: #{tpu_custom_call.1} parent=1 // pred_fallthru
      _
    // Predicated region
    $region18: #{tpu_custom_call.1} parent=1 // pred_check
      _
    $region19: #{tpu_custom_call.1} parent=1 // pred_check_branch
      %44 = sbr.rel (0) target = $region21
    $region20: #{tpu_custom_call.1} parent=1 // pred_region
      %46 = dma.done [#allocation6], 1024
    $region21: #{tpu_custom_call.1} parent=1 // pred_fallthru
      _
    %v47 = vld [vmem:[#allocation2] sm:$0xf]
    %v48 = vld [vmem:[#allocation2 + $0x4] sm:$0xf]
    %v49 = vld [vmem:[#allocation2 + $0x8] sm:$0x1]
    %v50 = vld [vmem:[#allocation5] sm:$0xf]
    %v51 = vld [vmem:[#allocation5 + $0x4] sm:$0xf]
    %v52 = vld [vmem:[#allocation5 + $0x8] sm:$0xf]
    %v53 = vld [vmem:[#allocation5 + $0xc] sm:$0xf]
    %v54 = vld [vmem:[#allocation5 + $0x10] sm:$0xf]
    %v55 = vld [vmem:[#allocation5 + $0x14] sm:$0xf]
    %v56 = vld [vmem:[#allocation5 + $0x18] sm:$0xf]
    %v57 = vld [vmem:[#allocation5 + $0x1c] sm:$0xf]
    %v58 = vld [vmem:[#allocation5 + $0x20] sm:$0xf]
    %v59 = vld [vmem:[#allocation5 + $0x24] sm:$0xf]
    %v60 = vld [vmem:[#allocation5 + $0x28] sm:$0xf]
    %v61 = vld [vmem:[#allocation5 + $0x2c] sm:$0xf]
    %v62 = vld [vmem:[#allocation5 + $0x30] sm:$0xf]
    %v63 = vld [vmem:[#allocation5 + $0x34] sm:$0xf]
    %v64 = vld [vmem:[#allocation5 + $0x38] sm:$0xf]
    %v65 = vld [vmem:[#allocation5 + $0x3c] sm:$0xf]
    %v66 = vld [vmem:[%s2] sm:$0x1]
    %v68 = vperm.slane %v66, 0
    %v73 = vunpack.c.l.b16 %v47
    %v74 = vunpack.c.l.b16 %v48
    %v75 = vunpack.c.l.b16 %v49
    %v76 = vpack.c.b16 %v74, %v73
    %v77 = vpack.c.b16 %v75, %v75
    %v96 = vunpack.c.l.b16 %v50
    %v97 = vunpack.c.l.b16 %v51
    %v98 = vunpack.c.l.b16 %v52
    %v99 = vunpack.c.l.b16 %v53
    %v100 = vunpack.c.l.b16 %v54
    %v101 = vunpack.c.l.b16 %v55
    %v102 = vunpack.c.l.b16 %v56
    %v103 = vunpack.c.l.b16 %v57
    %v104 = vunpack.c.l.b16 %v58
    %v105 = vunpack.c.l.b16 %v59
    %v106 = vunpack.c.l.b16 %v60
    %v107 = vunpack.c.l.b16 %v61
    %v108 = vunpack.c.l.b16 %v62
    %v109 = vunpack.c.l.b16 %v63
    %v110 = vunpack.c.l.b16 %v64
    %v111 = vunpack.c.l.b16 %v65
    %v112 = vpack.c.b16 %v97, %v96
    %v113 = vpack.c.b16 %v99, %v98
    %v114 = vpack.c.b16 %v101, %v100
    %v115 = vpack.c.b16 %v103, %v102
    %v116 = vpack.c.b16 %v105, %v104
    %v117 = vpack.c.b16 %v107, %v106
    %v118 = vpack.c.b16 %v109, %v108
    %v119 = vpack.c.b16 %v111, %v110
    %128 = vmatpush.bf16.msra.mxu0 %v119
    %129 = vmatpush.bf16.msra.mxu0 %v118
    %130 = vmatpush.bf16.msra.mxu0 %v117
    %131 = vmatpush.bf16.msra.mxu0 %v116
    %132 = vmatpush.bf16.msra.mxu0 %v115
    %133 = vmatpush.bf16.msra.mxu0 %v114
    %134 = vmatpush.bf16.msra.mxu0 %v113
    %135 = vmatpush.bf16.msra.mxu0 %v112
    %136 = vmatmul.bf16.gmra.mxu0 %v76
    %v137 = vpop.f32.mrf.mxu0
    %v138 = vadd.f32 %v68, %v137
    %v139 = vpop.f32.mrf.mxu0
    %v140 = vadd.f32 %v68, %v139
    %141 = vmatmul.bf16.gmra.mxu0 %v77
    %v142 = vpop.f32.mrf.mxu0
    %v143 = vadd.f32 %v68, %v142
    %v144 = vpop.f32.mrf.mxu0
    %145 = vdwg.mxu0
    %v146 = vpack.c.bf16 %v138, %v138
    %v147 = vpack.c.bf16 %v140, %v140
    %v148 = vpack.c.bf16 %v143, %v143
    %149 = vst [vmem:[#allocation7] sm:$0xf] %v146
    %150 = vst [vmem:[#allocation7 + $0x4] sm:$0xf] %v147
    %151 = vst [vmem:[#allocation7 + $0x8] sm:$0x1] %v148
    // Predicated region
    $region22: #{tpu_custom_call.1} parent=1 // pred_check
      _
    $region23: #{tpu_custom_call.1} parent=1 // pred_check_branch
      %153 = sbr.rel (0) target = $region25
    $region24: #{tpu_custom_call.1} parent=1 // pred_region
      %155 = vsyncadd [#allocation4], 0
      %s156 = sshll.u32 [#allocation7], 4
      %s157 = int_to_ptr.vmem [resolvable:$true] %s156
      %s158 = sshll.u32 %s3, 4
      %s159 = int_to_ptr.hbm [resolvable:$true] %s158
      %164 = dma.vmem_to_hbm [thread:$0]  %s157, 192, %s159, [#allocation4], 64, 64, 4
    $region25: #{tpu_custom_call.1} parent=1 // pred_fallthru
      _
    // Predicated region
    $region26: #{tpu_custom_call.1} parent=1 // pred_check
      _
    $region27: #{tpu_custom_call.1} parent=1 // pred_check_branch
      %166 = sbr.rel (0) target = $region29
    $region28: #{tpu_custom_call.1} parent=1 // pred_region
      %168 = dma.done [#allocation4], 192
    $region29: #{tpu_custom_call.1} parent=1 // pred_fallthru
      _
    %169 = vsyncpa [#allocation3], 1
    %170 = vsyncpa [#allocation6], 1
    %171 = vsyncpa [#allocation4], 1

</llo_original>
